<compile_context>
chip_gen: v6e
topology: v6e:2x2x1
jax: 0.10.0
libtpu: 0.0.40
codegen_flags: <defaults>
</compile_context>

<pallas_src>
import math
import functools

import jax
import jax.numpy as jnp
from jax.experimental import pallas as pl
from jax.experimental.pallas import tpu as pltpu


# ----------------------------------------------------------------------------
# Small helpers for picking grid/block sizes that evenly tile the arrays.
# ----------------------------------------------------------------------------
def _pick_chunk(n, target):
    """Largest divisor of n that is <= target (>=1)."""
    c = max(1, min(n, target))
    while n % c:
        c -= 1
    return c


def _pick_row_tile(n, target):
    """Divisor of n that is <= target and a multiple of 8, else n (full)."""
    if n <= target:
        return n
    for r in range(target, 7, -1):
        if n % r == 0 and r % 8 == 0:
            return r
    return n


def _pick_batch_block(b):
    """Split batch in two (v7x megacore) only when both halves stay (8,128)-legal."""
    if b >= 16 and b % 16 == 0:
        return b // 2
    return b


_VMEM_LIMIT = 32 * 1024 * 1024  # explicit scoped-VMEM limit, portable v5e/v6e/v7x


# ----------------------------------------------------------------------------
# Kernel 1: GRUCell context RNN (RNNContext).
#   Input-gate pre-activations gi = x @ W_ih + b_ih are precomputed outside.
#   Grid: (batch blocks [parallel], time chunks [arbitrary]); fori_loop inside.
# ----------------------------------------------------------------------------
def gru_context_kernel(gi_ref, lens_ref, whh_ref, bhh_ref, hn_ref, h_scr, *, chunk):
    c = pl.program_id(1)

    @pl.when(c == 0)
    def _():
        h_scr[...] = jnp.zeros_like(h_scr)
        hn_ref[...] = jnp.zeros_like(hn_ref)

    whh = whh_ref[...]
    bhh = bhh_ref[...]
    lens = lens_ref[...]                      # (Bb, 1) int32
    Hc = h_scr.shape[-1]

    def step(i, carry):
        h, hn = carry
        t = c * chunk + i
        gi = gi_ref[i]                        # (Bb, 3Hc) precomputed x@W_ih + b_ih
        gh = jnp.dot(h, whh, preferred_element_type=jnp.float32) + bhh
        # PyTorch GRUCell gate order: r, z, n
        r = jax.nn.sigmoid(gi[:, :Hc] + gh[:, :Hc])
        z = jax.nn.sigmoid(gi[:, Hc:2 * Hc] + gh[:, Hc:2 * Hc])
        n = jnp.tanh(gi[:, 2 * Hc:] + r * gh[:, 2 * Hc:])
        h_new = (1.0 - z) * n + z * h
        pm = ((t + 1) <= lens).astype(jnp.float32)          # (Bb, 1) padding mask
        hn_new = pm * h_new + (1.0 - pm) * hn
        return h_new, hn_new

    h, hn = jax.lax.fori_loop(0, chunk, step, (h_scr[...], hn_ref[...]))
    h_scr[...] = h
    hn_ref[...] = hn


def run_context_gru(gi_tbg, lens_b1, whh_t, bhh, Hc, *, time_chunk=64):
    T, B, G = gi_tbg.shape
    C = _pick_chunk(T, time_chunk)
    Bb = _pick_batch_block(B)
    nb, nc = B // Bb, T // C
    kern = functools.partial(gru_context_kernel, chunk=C)
    return pl.pallas_call(
        kern,
        out_shape=jax.ShapeDtypeStruct((B, Hc), jnp.float32),
        grid=(nb, nc),
        in_specs=[
            pl.BlockSpec((C, Bb, G), lambda b, c: (c, b, 0)),
            pl.BlockSpec((Bb, 1), lambda b, c: (b, 0)),
            pl.BlockSpec((Hc, G), lambda b, c: (0, 0)),
            pl.BlockSpec((1, G), lambda b, c: (0, 0)),
        ],
        out_specs=pl.BlockSpec((Bb, Hc), lambda b, c: (b, 0)),
        scratch_shapes=[pltpu.VMEM((Bb, Hc), jnp.float32)],
        compiler_params=pltpu.CompilerParams(
            dimension_semantics=("parallel", "arbitrary"),
            vmem_limit_bytes=_VMEM_LIMIT),
    )(gi_tbg, lens_b1, whh_t, bhh)


# ----------------------------------------------------------------------------
# Kernel 2: bidirectional LSTMCell sweep.
#   Gate pre-activations gx = x @ W_ih + (b_ih + b_hh) precomputed outside for
#   both directions; backward direction consumes time-reversed chunks via the
#   BlockSpec index_map and writes its outputs already time-ordered.
# ----------------------------------------------------------------------------
def bilstm_kernel(gxf_ref, gxb_ref, h0_ref, c0_ref, whf_ref, whb_ref,
                  of_ref, ob_ref, hf_scr, cf_scr, hb_scr, cb_scr, *, chunk):
    c = pl.program_id(1)

    @pl.when(c == 0)
    def _():
        hf_scr[...] = h0_ref[...]
        cf_scr[...] = c0_ref[...]
        hb_scr[...] = h0_ref[...]
        cb_scr[...] = c0_ref[...]

    H = hf_scr.shape[-1]
    whf = whf_ref[...]
    whb = whb_ref[...]

    def lstm_cell(gx, h, cs, wh):
        g = gx + jnp.dot(h, wh, preferred_element_type=jnp.float32)
        # PyTorch LSTMCell gate order: i, f, g, o
        i = jax.nn.sigmoid(g[:, :H])
        f = jax.nn.sigmoid(g[:, H:2 * H])
        gg = jnp.tanh(g[:, 2 * H:3 * H])
        o = jax.nn.sigmoid(g[:, 3 * H:])
        c_new = f * cs + i * gg
        h_new = o * jnp.tanh(c_new)
        return h_new, c_new

    def step(i, carry):
        hf, cf, hb, cb = carry
        hf, cf = lstm_cell(gxf_ref[i], hf, cf, whf)
        of_ref[i] = hf
        j = chunk - 1 - i                     # reversed position inside the chunk
        hb, cb = lstm_cell(gxb_ref[j], hb, cb, whb)
        ob_ref[j] = hb                        # lands at original time index -> already reversed
        return hf, cf, hb, cb

    hf, cf, hb, cb = jax.lax.fori_loop(
        0, chunk, step, (hf_scr[...], cf_scr[...], hb_scr[...], cb_scr[...]))
    hf_scr[...] = hf
    cf_scr[...] = cf
    hb_scr[...] = hb
    cb_scr[...] = cb


def run_bilstm(gxf, gxb, h0, c0, whf_t, whb_t, H, *, time_chunk=32):
    T, B, G = gxf.shape
    C = _pick_chunk(T, time_chunk)
    Bb = _pick_batch_block(B)
    nb, nc = B // Bb, T // C
    kern = functools.partial(bilstm_kernel, chunk=C)
    out_shape = (jax.ShapeDtypeStruct((T, B, H), jnp.float32),
                 jax.ShapeDtypeStruct((T, B, H), jnp.float32))
    return pl.pallas_call(
        kern,
        out_shape=out_shape,
        grid=(nb, nc),
        in_specs=[
            pl.BlockSpec((C, Bb, G), lambda b, c: (c, b, 0)),               # fwd gates
            pl.BlockSpec((C, Bb, G), lambda b, c: (nc - 1 - c, b, 0)),      # bwd gates (reversed)
            pl.BlockSpec((Bb, H), lambda b, c: (b, 0)),                     # h0
            pl.BlockSpec((Bb, H), lambda b, c: (b, 0)),                     # c0
            pl.BlockSpec((H, G), lambda b, c: (0, 0)),                      # W_hh forward
            pl.BlockSpec((H, G), lambda b, c: (0, 0)),                      # W_hh backward
        ],
        out_specs=(
            pl.BlockSpec((C, Bb, H), lambda b, c: (c, b, 0)),
            pl.BlockSpec((C, Bb, H), lambda b, c: (nc - 1 - c, b, 0)),
        ),
        scratch_shapes=[pltpu.VMEM((Bb, H), jnp.float32)] * 4,
        compiler_params=pltpu.CompilerParams(
            dimension_semantics=("parallel", "arbitrary"),
            vmem_limit_bytes=_VMEM_LIMIT),
    )(gxf, gxb, h0, c0, whf_t, whb_t)


# ----------------------------------------------------------------------------
# Kernel 3: attention core — batched softmax(QK^T)V over (batch*heads) blocks.
#   All projections (adjust_dims, in_proj, out_proj, final linear) are hoisted
#   to single large matmuls in the wrapper.
# ----------------------------------------------------------------------------
def attn_core_kernel(q_ref, k_ref, v_ref, o_ref, *, scale):
    q = q_ref[...]                                           # (Gb, T, hd)
    k = k_ref[...]
    v = v_ref[...]
    s = jnp.einsum('gqd,gkd->gqk', q, k,
                   preferred_element_type=jnp.float32) * scale
    p = jax.nn.softmax(s, axis=-1)
    o_ref[...] = jnp.einsum('gqk,gkd->gqd', p, v,
                            preferred_element_type=jnp.float32)


def run_attention_core(q, k, v, *, group_target=8):
    BH, T, hd = q.shape
    Gb = _pick_chunk(BH, group_target)
    kern = functools.partial(attn_core_kernel, scale=1.0 / math.sqrt(hd))
    return pl.pallas_call(
        kern,
        out_shape=jax.ShapeDtypeStruct((BH, T, hd), jnp.float32),
        grid=(BH // Gb,),
        in_specs=[pl.BlockSpec((Gb, T, hd), lambda g: (g, 0, 0))] * 3,
        out_specs=pl.BlockSpec((Gb, T, hd), lambda g: (g, 0, 0)),
        compiler_params=pltpu.CompilerParams(
            dimension_semantics=("parallel",),
            vmem_limit_bytes=_VMEM_LIMIT),
    )(q, k, v)


# ----------------------------------------------------------------------------
# Kernel 4: recurrent_impute + FusionModule + final imputation + L1 sums,
#   row-tiled over B*T.  Lane-axis concatenations are avoided via split weights.
#   The three L1 sums are resident SMEM accumulators across row tiles.
# ----------------------------------------------------------------------------
def fusion_kernel(hf_ref, hb_ref, feat_ref, m_ref, nv_ref,
                  wria_ref, wrib_ref, bri_ref,
                  w1a_ref, w1b_ref, b1_ref, w2_ref, b2_ref, wg_ref, bg_ref,
                  rnn_ref, fus_ref, fin_ref, loss_ref):
    r = pl.program_id(0)

    @pl.when(r == 0)
    def _():
        loss_ref[0] = jnp.float32(0.0)
        loss_ref[1] = jnp.float32(0.0)
        loss_ref[2] = jnp.float32(0.0)

    feat = feat_ref[...]
    m = m_ref[...]
    nv = nv_ref[...]

    # recurrent_impute: [hf, hb] @ W  ==  hf @ W[:H] + hb @ W[H:]
    rnn_imp = (jnp.dot(hf_ref[...], wria_ref[...], preferred_element_type=jnp.float32)
               + jnp.dot(hb_ref[...], wrib_ref[...], preferred_element_type=jnp.float32)
               + bri_ref[...])

    # FusionModule: cat([rnn_imp, feat]) @ W1  ==  rnn_imp @ W1a + feat @ W1b
    x1 = jax.nn.relu(jnp.dot(rnn_imp, w1a_ref[...], preferred_element_type=jnp.float32)
                     + jnp.dot(feat, w1b_ref[...], preferred_element_type=jnp.float32)
                     + b1_ref[...])
    x2 = jax.nn.relu(jnp.dot(x1, w2_ref[...], preferred_element_type=jnp.float32)
                     + b2_ref[...])
    beta = jax.nn.sigmoid(jnp.dot(x2, wg_ref[...], preferred_element_type=jnp.float32)
                          + bg_ref[...])

    fus = beta * feat + (1.0 - beta) * rnn_imp
    fin = m * nv + (1.0 - m) * fus

    rnn_ref[...] = rnn_imp
    fus_ref[...] = fus
    fin_ref[...] = fin

    loss_ref[0] += jnp.sum(jnp.abs(rnn_imp * m - nv * m))
    loss_ref[1] += jnp.sum(jnp.abs(feat * m - nv * m))
    loss_ref[2] += jnp.sum(jnp.abs(fus * m - nv * m))


def run_fusion(hf_bt, hb_bt, feat_bt, masks_bt, nv_bt, p, H, *, row_target=512):
    BT, V = feat_bt.shape
    R = _pick_row_tile(BT, row_target)
    ntiles = BT // R

    wri_a, wri_b = p['wri_t'][:H], p['wri_t'][H:]
    w1a, w1b = p['w1_t'][:V], p['w1_t'][V:]

    out_shape = (
        jax.ShapeDtypeStruct((BT, V), jnp.float32),   # rnn_imp
        jax.ShapeDtypeStruct((BT, V), jnp.float32),   # imp_fusion
        jax.ShapeDtypeStruct((BT, V), jnp.float32),   # final_imputation
        jax.ShapeDtypeStruct((3,), jnp.float32),      # [rnn, feat, fusion] L1 sums
    )
    row = lambda last: pl.BlockSpec((R, last), lambda r: (r, 0))
    full = lambda a, b: pl.BlockSpec((a, b), lambda r: (0, 0))
    in_specs = [
        row(H), row(H), row(V), row(V), row(V),
        full(H, V), full(H, V), full(1, V),
        full(V, V), full(V, V), full(1, V),
        full(V, V), full(1, V), full(V, 1), full(1, 1),
    ]
    out_specs = (
        row(V), row(V), row(V),
        pl.BlockSpec((3,), lambda r: (0,), memory_space=pltpu.MemorySpace.SMEM),
    )
    return pl.pallas_call(
        fusion_kernel,
        out_shape=out_shape,
        grid=(ntiles,),
        in_specs=in_specs,
        out_specs=out_specs,
        compiler_params=pltpu.CompilerParams(
            dimension_semantics=("arbitrary",),
            vmem_limit_bytes=_VMEM_LIMIT),
    )(hf_bt, hb_bt, feat_bt, masks_bt, nv_bt,
      wri_a, wri_b, p['bri'], w1a, w1b, p['b1'],
      p['w2_t'], p['b2'], p['wg_t'], p['bg'])


# ----------------------------------------------------------------------------
# Parameters (deterministic synthetic init; shapes follow Hybrid_IIN.__init__)
# ----------------------------------------------------------------------------
def init_params(key, V, H, Hc, num_heads=2):
    def u(k, shape, s):
        return jax.random.uniform(k, shape, jnp.float32, -s, s)

    head_dim = 2
    E = head_dim * num_heads
    if E % V != 0:
        head_dim = V // num_heads + (V % num_heads != 0)
        E = head_dim * num_heads
    D_in = 2 * V + Hc

    ks = list(jax.random.split(key, 32))
    nxt = iter(ks).__next__
    p = {'num_heads': num_heads}

    s = 1.0 / math.sqrt(V)
    p['decay_w_diag'] = u(nxt(), (V,), s)            # diag of W (W*I in linear)
    p['decay_b'] = u(nxt(), (V,), s)

    s = 1.0 / math.sqrt(Hc)
    p['gru_wih_t'] = u(nxt(), (2 * V, 3 * Hc), s)
    p['gru_whh_t'] = u(nxt(), (Hc, 3 * Hc), s)
    p['gru_bih'] = u(nxt(), (1, 3 * Hc), s)
    p['gru_bhh'] = u(nxt(), (1, 3 * Hc), s)

    s = 1.0 / math.sqrt(Hc)
    p['init_w_t'] = u(nxt(), (Hc, H), s)
    p['init_b'] = u(nxt(), (H,), s)

    s = 1.0 / math.sqrt(H)
    for d in ('f', 'b'):
        p[f'lstm_{d}_wih_t'] = u(nxt(), (D_in, 4 * H), s)
        p[f'lstm_{d}_whh_t'] = u(nxt(), (H, 4 * H), s)
        p[f'lstm_{d}_b'] = u(nxt(), (1, 4 * H), s)    # bias_ih + bias_hh folded

    s = 1.0 / math.sqrt(2 * H)
    p['wri_t'] = u(nxt(), (2 * H, V), s)
    p['bri'] = u(nxt(), (1, V), s)

    s = 1.0 / math.sqrt(V)
    p['adj_w_t'] = u(nxt(), (V, E), s)
    p['adj_b'] = u(nxt(), (1, E), s)
    s = 1.0 / math.sqrt(E)
    p['in_w_t'] = u(nxt(), (E, 3 * E), s)
    p['in_b'] = u(nxt(), (1, 3 * E), s)
    p['out_w_t'] = u(nxt(), (E, E), s)
    p['out_b'] = u(nxt(), (1, E), s)
    p['lin_w_t'] = u(nxt(), (E, V), s)
    p['lin_b'] = u(nxt(), (1, V), s)

    s = 1.0 / math.sqrt(2 * V)
    p['w1_t'] = u(nxt(), (2 * V, V), s)
    p['b1'] = u(nxt(), (1, V), s)
    s = 1.0 / math.sqrt(V)
    p['w2_t'] = u(nxt(), (V, V), s)
    p['b2'] = u(nxt(), (1, V), s)
    p['wg_t'] = u(nxt(), (V, 1), s)
    p['bg'] = u(nxt(), (1, 1), s)
    return p


# ----------------------------------------------------------------------------
# Forward pass (eval mode): JAX glue (big hoisted matmuls) + Pallas kernels.
# ----------------------------------------------------------------------------
def hybrid_iin_forward(params, data, hidden_size, context_hidden):
    seq_lengths = data['lengths']
    values = data['values']
    masks = data['masks']
    deltas = data['deltas']
    min_vals = data['min_vals']
    max_vals = data['max_vals']
    B, T, V = values.shape
    H, Hc = hidden_size, context_hidden

    t_idx = jnp.arange(1, T + 1, dtype=jnp.float32)
    pad_bt = (t_idx[None, :] <= seq_lengths[:, None].astype(jnp.float32)).astype(jnp.float32)
    padding_masks = jnp.broadcast_to(pad_bt[:, :, None], (B, T, V))

    data_means = values.sum(axis=1) / masks.sum(axis=1)      # matches reference (unmasked numerator)
    min_max_norm = max_vals - min_vals
    nv = (values - min_vals) / min_max_norm
    nmeans = (data_means - min_vals[:, 0, :]) / min_max_norm[:, 0, :]

    x_prime = jnp.concatenate([nv[:, :1, :], nv[:, :-1, :]], axis=1)

    # InputTemporalDecay: W * I -> diagonal linear.
    gamma = jax.nn.relu(deltas * params['decay_w_diag'][None, None, :]
                        + params['decay_b'][None, None, :])
    decay = jnp.exp(-gamma)
    x_decay = decay * x_prime + (1.0 - decay) * nmeans[:, None, :]
    x_complement = (masks * nv + (1.0 - masks) * x_decay) * padding_masks

    # --- context GRU: hoist x @ W_ih + b_ih into one big matmul, then Pallas recurrence ---
    ctx_in = jnp.concatenate([x_complement, deltas], axis=-1)            # (B,T,2V)
    gi = jnp.einsum('btd,dg->tbg', ctx_in, params['gru_wih_t']) + params['gru_bih'][None]
    lens_b1 = seq_lengths.astype(jnp.int32).reshape(B, 1)
    context_rnn = run_context_gru(gi, lens_b1, params['gru_whh_t'],
                                  params['gru_bhh'], Hc)                 # (B,Hc)

    h0 = context_rnn @ params['init_w_t'] + params['init_b']
    c0 = jnp.tanh(h0)

    # --- bidirectional LSTM: hoist x @ W_ih + b into big matmuls; dropout = identity ---
    lstm_in = jnp.concatenate(
        [x_complement, masks,
         jnp.broadcast_to(context_rnn[:, None, :], (B, T, Hc))], axis=-1)
    gxf = jnp.einsum('btd,dg->tbg', lstm_in, params['lstm_f_wih_t']) + params['lstm_f_b'][None]
    gxb = jnp.einsum('btd,dg->tbg', lstm_in, params['lstm_b_wih_t']) + params['lstm_b_b'][None]
    fwd_h, bwd_h = run_bilstm(gxf, gxb, h0, c0,
                              params['lstm_f_whh_t'], params['lstm_b_whh_t'], H)
    hf_bt = jnp.transpose(fwd_h, (1, 0, 2)).reshape(B * T, H)
    hb_bt = jnp.transpose(bwd_h, (1, 0, 2)).reshape(B * T, H)            # already time-ordered

    # --- multi-head attention imputation: projections hoisted, Pallas attention core ---
    E = params['adj_w_t'].shape[-1]
    nh = params['num_heads']
    hd = E // nh
    xe = x_complement @ params['adj_w_t'] + params['adj_b']              # (B,T,E)
    qkv = xe @ params['in_w_t'] + params['in_b']                         # (B,T,3E)
    q, k, v = qkv[..., :E], qkv[..., E:2 * E], qkv[..., 2 * E:]

    def split_heads(x):
        return x.reshape(B, T, nh, hd).transpose(0, 2, 1, 3).reshape(B * nh, T, hd)

    attn = run_attention_core(split_heads(q), split_heads(k), split_heads(v))
    attn = attn.reshape(B, nh, T, hd).transpose(0, 2, 1, 3).reshape(B, T, E)
    oe = attn @ params['out_w_t'] + params['out_b']
    attn_output = oe @ params['lin_w_t'] + params['lin_b']               # (B,T,V)

    # --- recurrent impute + fusion + final imputation + L1 sums (row-tiled Pallas) ---
    rnn_imp, imp_fusion, final_imp, losses = run_fusion(
        hf_bt, hb_bt,
        attn_output.reshape(B * T, V),
        masks.reshape(B * T, V),
        nv.reshape(B * T, V),
        params, H)
    rnn_imp = rnn_imp.reshape(B, T, V)
    imp_fusion = imp_fusion.reshape(B, T, V)
    final_imputation = final_imp.reshape(B, T, V)
    feat_imp = attn_output

    rnn_loss, feat_loss, fusion_loss = losses[0], losses[1], losses[2]
    total_loss = rnn_loss + feat_loss + fusion_loss
    mask_sum = masks.sum()

    # TODO(synk): training-only branch (dropout sampling, eval-mask losses) not
    # reproduced; this implements eval-mode forward semantics.

    def rescale(x):
        return jnp.where(padding_masks == 1.0, x * min_max_norm + min_vals, padding_masks)

    out_dict = {
        'loss': total_loss / mask_sum,
        'verbose_loss': [('rnn_loss', rnn_loss / mask_sum, mask_sum),
                         ('feat_loss', feat_loss / mask_sum, mask_sum),
                         ('fusion_loss', fusion_loss / mask_sum, mask_sum)],
        'loss_count': mask_sum,
        'imputations': rescale(final_imputation),
        'feat_imp': rescale(feat_imp),
        'hist_imp': rescale(rnn_imp),
    }
    return out_dict


# ----------------------------------------------------------------------------
if __name__ == "__main__":
    B, T, V = 2, 8, 4           # batch, time, num_vars
    H, Hc = 32, 16              # hidden_size, context_hidden

    key = jax.random.PRNGKey(0)
    k1, k2, k3 = jax.random.split(key, 3)

    values = jax.random.normal(k1, (B, T, V), jnp.float32)
    masks = (jax.random.uniform(k2, (B, T, V)) > 0.3).astype(jnp.float32)
    masks = masks.at[:, 0, :].set(1.0)             # guarantee masks.sum(dim=1) > 0
    deltas = jax.random.uniform(k3, (B, T, V), jnp.float32)
    min_vals = values.min(axis=1, keepdims=True) - 0.1
    max_vals = values.max(axis=1, keepdims=True) + 0.1
    lengths = jnp.array([T, T - 2], dtype=jnp.int32)
    assert int(lengths.max()) == T                 # matches PyTorch loop over max(seq_lengths)

    data = {'lengths': lengths, 'values': values, 'masks': masks,
            'deltas': deltas, 'min_vals': min_vals, 'max_vals': max_vals}

    params = init_params(jax.random.PRNGKey(42), V, H, Hc, num_heads=2)

    out = hybrid_iin_forward(params, data, hidden_size=H, context_hidden=Hc)
    jax.block_until_ready(out['loss'])
    jax.block_until_ready(out['imputations'])
    jax.block_until_ready(out['feat_imp'])
    jax.block_until_ready(out['hist_imp'])
    print("KERNEL_OK")
</pallas_src>

<mosaic_0001>
module attributes {stable_mosaic.version = 11 : i64} {
  func.func @gru_context_kernel(%arg0: i32, %arg1: i32, %arg2: memref<8x2x48xf32, #tpu.memory_space<vmem>>, %arg3: memref<2x1xi32, #tpu.memory_space<vmem>>, %arg4: memref<16x48xf32, #tpu.memory_space<vmem>>, %arg5: memref<1x48xf32, #tpu.memory_space<vmem>>, %arg6: memref<2x16xf32, #tpu.memory_space<vmem>>, %arg7: memref<2x16xf32, #tpu.memory_space<vmem>>) attributes {dimension_semantics = [#tpu.dimension_semantics<parallel>, #tpu.dimension_semantics<arbitrary>], iteration_bounds = array<i64: 1, 1>, scalar_prefetch = 0 : i64, scratch_operands = 1 : i64, tpu.core_type = #tpu.core_type<tc>, window_params = [{transform_indices = @transform_0, window_bounds = array<i64: 8, 2, 48>}, {transform_indices = @transform_1, window_bounds = array<i64: 2, 1>}, {pipeline_mode = #tpu.pipeline_mode<synchronous>, transform_indices = @transform_2, window_bounds = array<i64: 16, 48>}, {pipeline_mode = #tpu.pipeline_mode<synchronous>, transform_indices = @transform_3, window_bounds = array<i64: 1, 48>}, {transform_indices = @transform_4, window_bounds = array<i64: 2, 16>}]} {
    %c0_i32 = arith.constant 0 : i32
    %0 = arith.cmpi eq, %arg1, %c0_i32 : i32
    %1 = arith.extui %0 : i1 to i32
    %c0_i32_0 = arith.constant 0 : i32
    %2 = arith.cmpi ne, %1, %c0_i32_0 : i32
    scf.if %2 {
      %cst = arith.constant 0.000000e+00 : f32
      %12 = vector.broadcast %cst : f32 to vector<2x16xf32>
      %c0_16 = arith.constant 0 : index
      %c0_17 = arith.constant 0 : index
      %13 = vector.load %arg7[%c0_16, %c0_17] : memref<2x16xf32, #tpu.memory_space<vmem>>, vector<2x16xf32>
      tpu.vector_store %arg7[%c0_16, %c0_17], %12 {strides = array<i32>} : memref<2x16xf32, #tpu.memory_space<vmem>>, vector<2x16xf32>,
      %cst_18 = arith.constant 0.000000e+00 : f32
      %14 = vector.broadcast %cst_18 : f32 to vector<2x16xf32>
      %c0_19 = arith.constant 0 : index
      %c0_20 = arith.constant 0 : index
      %15 = vector.load %arg6[%c0_19, %c0_20] : memref<2x16xf32, #tpu.memory_space<vmem>>, vector<2x16xf32>
      tpu.vector_store %arg6[%c0_19, %c0_20], %14 {strides = array<i32>} : memref<2x16xf32, #tpu.memory_space<vmem>>, vector<2x16xf32>,
    } else {
    }
    %c0 = arith.constant 0 : index
    %c0_1 = arith.constant 0 : index
    %3 = vector.load %arg4[%c0, %c0_1] : memref<16x48xf32, #tpu.memory_space<vmem>>, vector<16x48xf32>
    %c0_2 = arith.constant 0 : index
    %c0_3 = arith.constant 0 : index
    %4 = vector.load %arg5[%c0_2, %c0_3] : memref<1x48xf32, #tpu.memory_space<vmem>>, vector<1x48xf32>
    %c0_4 = arith.constant 0 : index
    %c0_5 = arith.constant 0 : index
    %5 = vector.load %arg3[%c0_4, %c0_5] : memref<2x1xi32, #tpu.memory_space<vmem>>, vector<2x1xi32>
    %c0_6 = arith.constant 0 : index
    %c0_7 = arith.constant 0 : index
    %6 = vector.load %arg7[%c0_6, %c0_7] : memref<2x16xf32, #tpu.memory_space<vmem>>, vector<2x16xf32>
    %c0_8 = arith.constant 0 : index
    %c0_9 = arith.constant 0 : index
    %7 = vector.load %arg6[%c0_8, %c0_9] : memref<2x16xf32, #tpu.memory_space<vmem>>, vector<2x16xf32>
    %c0_i32_10 = arith.constant 0 : i32
    %c8_i32 = arith.constant 8 : i32
    %8 = arith.addi %c0_i32_10, %c8_i32 : i32
    %c1_i32 = arith.constant 1 : i32
    %9:2 = scf.for %arg8 = %c0_i32_10 to %8 step %c1_i32 iter_args(%arg9 = %6, %arg10 = %7) -> (vector<2x16xf32>, vector<2x16xf32>)  : i32 {
      %c8_i32_16 = arith.constant 8 : i32
      %12 = arith.muli %arg1, %c8_i32_16 : i32
      %13 = arith.addi %12, %arg8 : i32
      %14 = arith.index_cast %arg8 : i32 to index
      %c0_17 = arith.constant 0 : index
      %c0_18 = arith.constant 0 : index
      %15 = vector.load %arg2[%14, %c0_17, %c0_18] : memref<8x2x48xf32, #tpu.memory_space<vmem>>, vector<1x2x48xf32>
      %16 = vector.shape_cast %15 : vector<1x2x48xf32> to vector<2x48xf32>
      %cst = arith.constant dense<0.000000e+00> : vector<2x48xf32>
      %17 = tpu.matmul %arg9, %3, %cst {dimension_numbers = #tpu.dot_dimension_numbers<[1], [0], [0], [1], [0, 0, 1, 1], [], []>} : vector<2x16xf32>, vector<16x48xf32>, vector<2x48xf32> -> vector<2x48xf32>
      %18 = vector.broadcast %4 : vector<1x48xf32> to vector<2x48xf32>
      %19 = arith.addf %17, %18 : vector<2x48xf32>
      %20 = vector.extract_strided_slice %16 {offsets = [0, 0], sizes = [2, 16], strides = [1, 1]} : vector<2x48xf32> to vector<2x16xf32>
      %21 = vector.extract_strided_slice %19 {offsets = [0, 0], sizes = [2, 16], strides = [1, 1]} : vector<2x48xf32> to vector<2x16xf32>
      %22 = arith.addf %20, %21 : vector<2x16xf32>
      %23 = arith.negf %22 : vector<2x16xf32>
      %24 = math.exp %23 : vector<2x16xf32>
      %cst_19 = arith.constant 1.000000e+00 : f32
      %25 = vector.broadcast %cst_19 : f32 to vector<2x16xf32>
      %26 = arith.addf %25, %24 : vector<2x16xf32>
      %27 = arith.divf %25, %26 : vector<2x16xf32>
      %28 = vector.extract_strided_slice %16 {offsets = [0, 16], sizes = [2, 16], strides = [1, 1]} : vector<2x48xf32> to vector<2x16xf32>
      %29 = vector.extract_strided_slice %19 {offsets = [0, 16], sizes = [2, 16], strides = [1, 1]} : vector<2x48xf32> to vector<2x16xf32>
      %30 = arith.addf %28, %29 : vector<2x16xf32>
      %31 = arith.negf %30 : vector<2x16xf32>
      %32 = math.exp %31 : vector<2x16xf32>
      %cst_20 = arith.constant 1.000000e+00 : f32
      %33 = vector.broadcast %cst_20 : f32 to vector<2x16xf32>
      %34 = arith.addf %33, %32 : vector<2x16xf32>
      %35 = arith.divf %33, %34 : vector<2x16xf32>
      %36 = vector.extract_strided_slice %16 {offsets = [0, 32], sizes = [2, 16], strides = [1, 1]} : vector<2x48xf32> to vector<2x16xf32>
      %37 = vector.extract_strided_slice %19 {offsets = [0, 32], sizes = [2, 16], strides = [1, 1]} : vector<2x48xf32> to vector<2x16xf32>
      %38 = arith.mulf %27, %37 : vector<2x16xf32>
      %39 = arith.addf %36, %38 : vector<2x16xf32>
      %40 = math.tanh %39 : vector<2x16xf32>
      %cst_21 = arith.constant 1.000000e+00 : f32
      %41 = vector.broadcast %cst_21 : f32 to vector<2x16xf32>
      %42 = arith.subf %41, %35 : vector<2x16xf32>
      %43 = arith.mulf %42, %40 : vector<2x16xf32>
      %44 = arith.mulf %35, %arg9 : vector<2x16xf32>
      %45 = arith.addf %43, %44 : vector<2x16xf32>
      %c1_i32_22 = arith.constant 1 : i32
      %46 = arith.addi %13, %c1_i32_22 : i32
      %47 = vector.broadcast %46 : i32 to vector<2x1xi32>
      %48 = arith.cmpi sle, %47, %5 : vector<2x1xi32>
      %49 = arith.extui %48 : vector<2x1xi1> to vector<2x1xi32>
      %50 = arith.sitofp %49 : vector<2x1xi32> to vector<2x1xf32>
      %51 = vector.broadcast %50 : vector<2x1xf32> to vector<2x16xf32>
      %52 = arith.mulf %51, %45 : vector<2x16xf32>
      %cst_23 = arith.constant 1.000000e+00 : f32
      %53 = vector.broadcast %cst_23 : f32 to vector<2x1xf32>
      %54 = arith.subf %53, %50 : vector<2x1xf32>
      %55 = vector.broadcast %54 : vector<2x1xf32> to vector<2x16xf32>
      %56 = arith.mulf %55, %arg10 : vector<2x16xf32>
      %57 = arith.addf %52, %56 : vector<2x16xf32>
      scf.yield %45, %57 : vector<2x16xf32>, vector<2x16xf32>
    }
    %c8_i32_11 = arith.constant 8 : i32
    %c0_12 = arith.constant 0 : index
    %c0_13 = arith.constant 0 : index
    %10 = vector.load %arg7[%c0_12, %c0_13] : memref<2x16xf32, #tpu.memory_space<vmem>>, vector<2x16xf32>
    tpu.vector_store %arg7[%c0_12, %c0_13], %9#0 {strides = array<i32>} : memref<2x16xf32, #tpu.memory_space<vmem>>, vector<2x16xf32>,
    %c0_14 = arith.constant 0 : index
    %c0_15 = arith.constant 0 : index
    %11 = vector.load %arg6[%c0_14, %c0_15] : memref<2x16xf32, #tpu.memory_space<vmem>>, vector<2x16xf32>
    tpu.vector_store %arg6[%c0_14, %c0_15], %9#1 {strides = array<i32>} : memref<2x16xf32, #tpu.memory_space<vmem>>, vector<2x16xf32>,
    return
  }
  func.func @transform_0(%arg0: i32, %arg1: i32) -> (i32, i32, i32) {
    %c0_i32 = arith.constant 0 : i32
    %c0_i32_0 = arith.constant 0 : i32
    return %arg1, %arg0, %c0_i32 : i32, i32, i32
  }
  func.func @transform_1(%arg0: i32, %arg1: i32) -> (i32, i32) {
    %c0_i32 = arith.constant 0 : i32
    %c0_i32_0 = arith.constant 0 : i32
    return %arg0, %c0_i32 : i32, i32
  }
  func.func @transform_2(%arg0: i32, %arg1: i32) -> (i32, i32) {
    %c0_i32 = arith.constant 0 : i32
    %c0_i32_0 = arith.constant 0 : i32
    %c0_i32_1 = arith.constant 0 : i32
    return %c0_i32, %c0_i32_0 : i32, i32
  }
  func.func @transform_3(%arg0: i32, %arg1: i32) -> (i32, i32) {
    %c0_i32 = arith.constant 0 : i32
    %c0_i32_0 = arith.constant 0 : i32
    %c0_i32_1 = arith.constant 0 : i32
    return %c0_i32, %c0_i32_0 : i32, i32
  }
  func.func @transform_4(%arg0: i32, %arg1: i32) -> (i32, i32) {
    %c0_i32 = arith.constant 0 : i32
    %c0_i32_0 = arith.constant 0 : i32
    return %arg0, %c0_i32 : i32, i32
  }
}

</mosaic_0001>

<llo_original>
// kernel: tpu_custom_call.1
$region0: #{tpu_custom_call.1}
  #allocation0 [shape = 'u32[]', space=smem, size = 0x4, offset = 0x4, fixed_abs, tag = 'smem constant byte address 0x4 - core index']
  #allocation1 [shape = 'u32[144,128]{1,0:T(1,128)}', space=vmem, size = 0x12000, scoped, tag = 'internal scratch']
  #allocation2 [shape = 'f32[2,16]{1,0:T(2,128)}', space=vmem, size = 0x400, scoped, tag = 'scratch operand']
  %s0 = inlined_call_operand.hbm [shape: f32[8,2,48], index: 0, kind: input, shape index: {}]
  %s1 = inlined_call_operand.vmem [shape: s32[2,1], index: 1, kind: input, shape index: {}]
  %s2 = inlined_call_operand.hbm [shape: f32[16,48], index: 2, kind: input, shape index: {}]
  %s3 = inlined_call_operand.vmem [shape: f32[1,48], index: 3, kind: input, shape index: {}]
  %s4 = inlined_call_operand.hbm [shape: f32[2,16], index: 4, kind: output, shape index: {}]
  %s5 = sld [smem:[#allocation0]]
  $region45: #{tpu_custom_call.1} parent=0
    _
  %s7 = ssub.s32 1, %s5
  %s8 = scalar_select 0, %s7, %s5
  $region1: #{tpu_custom_call.1} parent=0
    #allocation3 [shape = 'u8[8192]{0}', space=vmem, size = 0x2000, scoped, tag = 'input window, operand 0, single buffered']
    #allocation4 [shape = 's32[1]{0}', space=sflag, size = 0x4, scoped, tag = 'scoped memory for tpu_custom_call.1']
    #allocation5 [shape = 's32[1]{0}', space=sflag, size = 0x4, scoped, tag = 'scoped memory for tpu_custom_call.1']
    #allocation6 [shape = 'u8[8192]{0}', space=vmem, size = 0x2000, scoped, tag = 'input window, operand 2, single buffered']
    #allocation7 [shape = 's32[1]{0}', space=sflag, size = 0x4, scoped, tag = 'scoped memory for tpu_custom_call.1']
    #allocation8 [shape = 'u8[1024]{0}', space=vmem, size = 0x400, scoped, tag = 'output window, operand 0, single buffered']
    %9 = vsyncpa [#allocation4], 0
    %10 = vsyncpa [#allocation7], 0
    %11 = vsyncpa [#allocation5], 0
    // Predicated region
    $region2: #{tpu_custom_call.1} parent=1 // pred_check
      _
    $region3: #{tpu_custom_call.1} parent=1 // pred_check_branch
      %13 = sbr.rel (0) target = $region5
    $region4: #{tpu_custom_call.1} parent=1 // pred_region
      %s15 = ssub.s32 256, 256
      %16 = vsyncadd [#allocation4], %s15
      %s17 = sshll.u32 [#allocation3], 4
      %s18 = int_to_ptr.vmem [resolvable:$true] %s17
      %23 = dma.hbm_to_vmem [thread:$0]  %s0, 256, %s18, [#allocation4], 32, 32, 2
    $region5: #{tpu_custom_call.1} parent=1 // pred_fallthru
      _
    // Predicated region
    $region6: #{tpu_custom_call.1} parent=1 // pred_check
      _
    $region7: #{tpu_custom_call.1} parent=1 // pred_check_branch
      %25 = sbr.rel (0) target = $region9
    $region8: #{tpu_custom_call.1} parent=1 // pred_region
      _
    $region9: #{tpu_custom_call.1} parent=1 // pred_fallthru
      _
    // Predicated region
    $region10: #{tpu_custom_call.1} parent=1 // pred_check
      _
    $region11: #{tpu_custom_call.1} parent=1 // pred_check_branch
      %27 = sbr.rel (0) target = $region13
    $region12: #{tpu_custom_call.1} parent=1 // pred_region
      %s29 = ssub.s32 256, 256
      %30 = vsyncadd [#allocation7], %s29
      %s31 = sshll.u32 [#allocation6], 4
      %s32 = int_to_ptr.vmem [resolvable:$true] %s31
      %37 = dma.hbm_to_vmem [thread:$0]  %s2, 256, %s32, [#allocation7], 128, 128, 8
    $region13: #{tpu_custom_call.1} parent=1 // pred_fallthru
      _
    // Predicated region
    $region14: #{tpu_custom_call.1} parent=1 // pred_check
      _
    $region15: #{tpu_custom_call.1} parent=1 // pred_check_branch
      %39 = sbr.rel (0) target = $region17
    $region16: #{tpu_custom_call.1} parent=1 // pred_region
      _
    $region17: #{tpu_custom_call.1} parent=1 // pred_fallthru
      _
    // Predicated region
    $region18: #{tpu_custom_call.1} parent=1 // pred_check
      _
    $region19: #{tpu_custom_call.1} parent=1 // pred_check_branch
      %41 = sbr.rel (0) target = $region21
    $region20: #{tpu_custom_call.1} parent=1 // pred_region
      %42 = dma.done [#allocation4], 256
    $region21: #{tpu_custom_call.1} parent=1 // pred_fallthru
      _
    // Predicated region
    $region22: #{tpu_custom_call.1} parent=1 // pred_check
      _
    $region23: #{tpu_custom_call.1} parent=1 // pred_check_branch
      %44 = sbr.rel (0) target = $region25
    $region24: #{tpu_custom_call.1} parent=1 // pred_region
      %45 = dma.done [#allocation7], 256
    $region25: #{tpu_custom_call.1} parent=1 // pred_fallthru
      _
    %p46 = scmp.eq.s32.totalorder 0, 0
    // Predicated region
    $region26: #{tpu_custom_call.1} parent=1 // pred_check
      %p47 = pneg %p46
    $region27: #{tpu_custom_call.1} parent=1 // pred_check_branch
      %49 = sbr.rel (%p47) target = $region29
    $region28: #{tpu_custom_call.1} parent=1 // pred_region
      %vm50 = vcmask 123904
      %51 = vst.msk [vmem:[#allocation2] sm:$0x3] %vm50, 0.0
      %52 = vst.msk [vmem:[#allocation8] sm:$0x3] %vm50, 0.0
    $region29: #{tpu_custom_call.1} parent=1 // pred_fallthru
      _
    %v53 = vld [vmem:[#allocation6] sm:$0xff]
    %v54 = vld [vmem:[#allocation6 + $0x8] sm:$0xff]
    %v55 = vld [vmem:[%s3] sm:$0x1]
    %v56 = vld [vmem:[%s1] sm:$0x3]
    %v57 = vld [vmem:[#allocation2] sm:$0x3]
    %v58 = vld [vmem:[#allocation8] sm:$0x3]
    loop: start=0, step=1, limit=8
    $region30: #{tpu_custom_call.1} parent=1 // loop_pre_header
      _
    $region31: #{tpu_custom_call.1} parent=1 // loop_header
      %s60 = sphi 0, %s64
      %p61 = scmp.ge.s32.totalorder %s60, 8
      %v65 = vphi %v57, %v206
      %v66 = vphi %v58, %v210
    $region32: #{tpu_custom_call.1} parent=1 // loop_header_branch
      %63 = sbr.rel (%p61) target = $region36
    $region33: #{tpu_custom_call.1} parent=1 // loop_body
      %s67 = smul.u32 0, 8
      %s68 = sadd.s32 %s67, %s60
      %s69 = smul.u32 %s60, 2
      %s70 = scalar_lea.vmem [#allocation3], %s69
      %v71 = vld [vmem:[%s70] sm:$0x3]
      %v73 = vlaneseq
      %v74 = vshrl.u32 %v73, 7
      %v75 = vsub.s32 0, %v74
      %v76 = vrot.slane %v55, %v75
      %vm78 = vcmask 130048
      %v80 = vsel %vm78, %v65, 0
      %82 = vmatprep.subr.mxu0 0.0
      %83 = vmatpush1.msra.mxu0 0.0
      %84 = vmatprep.subr.mxu0 0.0
      %85 = vmatpush1.msra.mxu0 0.0
      %86 = vmatprep.subr.mxu0 0.0
      %87 = vmatpush1.msra.mxu0 0.0
      %88 = vmatprep.subr.mxu0 0.0
      %89 = vmatpush1.msra.mxu0 0.0
      %90 = vmatprep.subr.mxu0 0.0
      %91 = vmatpush1.msra.mxu0 0.0
      %92 = vmatprep.subr.mxu0 0.0
      %93 = vmatpush1.msra.mxu0 0.0
      %94 = vmatprep.subr.mxu0 0.0
      %95 = vmatpush1.msra.mxu0 0.0
      %96 = vmatprep.subr.mxu0 0.0
      %97 = vmatpush1.msra.mxu0 0.0
      %98 = vmatprep.subr.mxu0 0.0
      %99 = vmatpush1.msra.mxu0 0.0
      %100 = vmatprep.subr.mxu0 0.0
      %101 = vmatpush1.msra.mxu0 0.0
      %102 = vmatprep.subr.mxu0 0.0
      %103 = vmatpush1.msra.mxu0 0.0
      %104 = vmatprep.subr.mxu0 0.0
      %105 = vmatpush1.msra.mxu0 0.0
      %106 = vmatprep.subr.mxu0 0.0
      %107 = vmatpush1.msra.mxu0 0.0
      %108 = vmatprep.subr.mxu0 0.0
      %109 = vmatpush1.msra.mxu0 0.0
      %110 = vmatprep.subr.mxu0 0.0
      %111 = vmatpush1.msra.mxu0 %v54
      %112 = vmatprep.subr.mxu0 0.0
      %113 = vmatpush1.msra.mxu0 %v53
      %114 = vmatprep.subr.mxu0 0.0
      %115 = vmatpush2.msra.mxu0 0.0
      %116 = vmatprep.subr.mxu0 0.0
      %117 = vmatpush2.msra.mxu0 0.0
      %118 = vmatprep.subr.mxu0 0.0
      %119 = vmatpush2.msra.mxu0 0.0
      %120 = vmatprep.subr.mxu0 0.0
      %121 = vmatpush2.msra.mxu0 0.0
      %122 = vmatprep.subr.mxu0 0.0
      %123 = vmatpush2.msra.mxu0 0.0
      %124 = vmatprep.subr.mxu0 0.0
      %125 = vmatpush2.msra.mxu0 0.0
      %126 = vmatprep.subr.mxu0 0.0
      %127 = vmatpush2.msra.mxu0 0.0
      %128 = vmatprep.subr.mxu0 0.0
      %129 = vmatpush2.msra.mxu0 0.0
      %130 = vmatprep.subr.mxu0 0.0
      %131 = vmatpush2.msra.mxu0 0.0
      %132 = vmatprep.subr.mxu0 0.0
      %133 = vmatpush2.msra.mxu0 0.0
      %134 = vmatprep.subr.mxu0 0.0
      %135 = vmatpush2.msra.mxu0 0.0
      %136 = vmatprep.subr.mxu0 0.0
      %137 = vmatpush2.msra.mxu0 0.0
      %138 = vmatprep.subr.mxu0 0.0
      %139 = vmatpush2.msra.mxu0 0.0
      %140 = vmatprep.subr.mxu0 0.0
      %141 = vmatpush2.msra.mxu0 0.0
      %142 = vmatprep.subr.mxu0 0.0
      %143 = vmatpush2.msra.mxu0 0.0
      %144 = vmatprep.subr.mxu0 0.0
      %145 = vmatpush2.msra.mxu0 0.0
      %146 = vmatprep.mubr.f32.mxu0 0.0
      %147 = vmatmul.mubr.f32.gmra.mxu0 %v80
      %v148 = vpop.f32.mrf.mxu0
      %v149 = vadd.f32 %v76, %v148
      %v150 = vpop.f32.mrf.mxu0
      %151 = vdwg.mxu0
      %v152 = vadd.f32 %v71, %v149
      %v153 = vxor.u32 %v152, 2147483648
      %v154 = vmul.f32 %v153, 1.442695
      %v155 = vpow.pop %v154
      %v156 = vadd.f32 %v155, 1.0
      %v157 = vrcp.pop %v156
      %v158 = vmul.f32 1.0, %v157
      %160 = vrot.lane.b32.xlu0 %v149, 96
      %v161 = vpop.permute.xlu0 %160
      %v163 = vmul.f32 %v158, %v161
      %165 = vrot.lane.b32.xlu0 %v163, 32
      %v166 = vpop.permute.xlu0 %165
      %v168 = vadd.f32 %v71, %v166
      %v169 = vtanh.pop %v168
      %v170 = vsub.f32 1.0, %v158
      %172 = vrot.lane.b32.xlu0 %v169, 112
      %v173 = vpop.permute.xlu0 %172
      %v175 = vmul.f32 %v170, %v173
      %176 = vrot.lane.b32.xlu0 %v65, 16
      %v177 = vpop.permute.xlu0 %176
      %v179 = vmul.f32 %v158, %v177
      %v180 = vadd.f32 %v175, %v179
      %s181 = sadd.s32 %s68, 1
      %v182 = vstv %s181
      %vm183 = vcmp.le.s32.totalorder %v182, %v56
      %v184 = vsel %vm183, 1, 0
      %v185 = vcvt.s32.f32 %v184
      %187 = vset.pattern.permute.xlu0 0
      %188 = vperm.xlu0 %187, %v185
      %v189 = vpop.permute.xlu0 %188
      %v191 = vmul.f32 %v189, %v180
      %v192 = vsub.f32 1.0, %v185
      %194 = vset.pattern.permute.xlu0 0
      %195 = vperm.xlu0 %194, %v192
      %v196 = vpop.permute.xlu0 %195
      %v198 = vmul.f32 %v196, %v66
      %200 = vrot.lane.b32.xlu0 %v198, 16
      %v201 = vpop.permute.xlu0 %200
      %v203 = vadd.f32 %v191, %v201
      %205 = vrot.lane.b32.xlu0 %v180, 112
      %v206 = vpop.permute.xlu0 %205
      %209 = vrot.lane.b32.xlu0 %v203, 112
      %v210 = vpop.permute.xlu0 %209
    $region34: #{tpu_custom_call.1} parent=1 // loop_footer
      %s64 = sadd.s32 1, %s60
    $region35: #{tpu_custom_call.1} parent=1 // loop_footer_branch
      %59 = sbr.rel target = $region31
    $region36: #{tpu_custom_call.1} parent=1 // loop_exit
      _
    %vm212 = vcmask 123904
    %213 = vst.msk [vmem:[#allocation2] sm:$0x3] %vm212, %v65
    %214 = vst.msk [vmem:[#allocation8] sm:$0x3] %vm212, %v66
    // Predicated region
    $region37: #{tpu_custom_call.1} parent=1 // pred_check
      _
    $region38: #{tpu_custom_call.1} parent=1 // pred_check_branch
      %216 = sbr.rel (0) target = $region40
    $region39: #{tpu_custom_call.1} parent=1 // pred_region
      %s218 = ssub.s32 32, 32
      %219 = vsyncadd [#allocation5], %s218
      %s221 = sshll.u32 [#allocation8], 4
      %s222 = int_to_ptr.vmem [resolvable:$true] %s221
      %224 = dma.vmem_to_hbm [thread:$0]  %s222, 32, %s4, [#allocation5]
    $region40: #{tpu_custom_call.1} parent=1 // pred_fallthru
      _
    // Predicated region
    $region41: #{tpu_custom_call.1} parent=1 // pred_check
      _
    $region42: #{tpu_custom_call.1} parent=1 // pred_check_branch
      %226 = sbr.rel (0) target = $region44
    $region43: #{tpu_custom_call.1} parent=1 // pred_region
      %227 = dma.done [#allocation5], 32
    $region44: #{tpu_custom_call.1} parent=1 // pred_fallthru
      _
    %228 = vsyncpa [#allocation4], 1
    %229 = vsyncpa [#allocation7], 1
    %230 = vsyncpa [#allocation5], 1

</llo_original>
